<compile_context>
chip_gen: v5e
topology: v5e:2x2
jax: 0.10.0
libtpu: 0.0.40
codegen_flags: <defaults>
</compile_context>

<pallas_src>
import functools

import jax
import jax.numpy as jnp
from jax.experimental import pallas as pl
from jax.experimental.pallas import tpu as pltpu

_LANES = 128  # output broadcast across full lane width -> unmasked store


def _majority_vote_kernel(coeff_ref, x_ref, w_ref, b_ref, o_ref, *,
                          n_models, n_classes):
    # x arrives in its original f32; cast to bf16 on the VPU right before the
    # MXU (cheaper than a separate wrapper-side cast pass over HBM).
    x_bf16 = x_ref[...].astype(jnp.bfloat16)

    # One fused matmul for ALL models: (TILE_B, D) @ (D, M*K) -> f32 acc.
    logits_all = jnp.dot(
        x_bf16, w_ref[...], preferred_element_type=jnp.float32
    ) + b_ref[...]

    acc = jnp.zeros((logits_all.shape[0], n_classes), jnp.float32)
    # Static unroll over models (n_models baked in at trace time).
    # TODO(synk): for large ensembles, replace the per-model lane slices with
    #             a segmented softmax over the packed 128-lane tile.
    for m in range(n_models):
        lg = logits_all[:, m * n_classes:(m + 1) * n_classes]
        # numerically-stable, *exact* softmax (matches reference math).
        z = lg - jnp.max(lg, axis=-1, keepdims=True)
        e = jnp.exp(z)
        sm = e / jnp.sum(e, axis=-1, keepdims=True)
        coeff = coeff_ref[m]  # scalar read from SMEM
        # results += softmax(logits)*coeff ; results += logits*coeff
        acc = acc + (sm + lg) * coeff

    # argmax(-1) with first-index tie-break (matches torch/jnp argmax).
    mx = jnp.max(acc, axis=-1, keepdims=True)
    ids = jax.lax.broadcasted_iota(jnp.int32, acc.shape, 1)
    first = jnp.min(
        jnp.where(acc == mx, ids, jnp.int32(n_classes)),
        axis=-1, keepdims=True,
    )
    # Lane-dense, unmasked store; int8 keeps the writeback 4x smaller than
    # int32 (n_classes <= 127 guaranteed by the wrapper).
    o_ref[...] = jnp.broadcast_to(first, o_ref.shape).astype(jnp.int8)


def pack_ensemble(w_stack, b_stack):
    """One-time packing of the ensemble weights (hoisted out of the call path).

    w_stack: (M, D, K) -> (D, M*K) bf16; b_stack: (M, 1, K) -> (1, M*K) f32.
    """
    M, D, K = w_stack.shape
    w_packed = (jnp.transpose(w_stack, (1, 0, 2))
                .reshape(D, M * K).astype(jnp.bfloat16))
    b_packed = b_stack.reshape(1, M * K).astype(jnp.float32)
    return w_packed, b_packed


def _pick_tile_b(batch, d):
    """Batch-tile rows: ~4 MiB f32 x buffer, multiple of 128, capped by B."""
    if batch <= 128:
        return batch  # single block; full-array-dims exception applies
    rows = ((4 << 20) // (d * 4)) // 128 * 128
    rows = max(128, min(1024, rows))
    padded_b = -(-batch // 128) * 128
    return min(rows, padded_b)


@jax.jit
def majority_vote(x_nchw, w_packed, b_packed, coeffs):
    """x_nchw: (B,C,H,W) f32; w_packed: (D,M*K) bf16; b_packed: (1,M*K) f32;
    coeffs: (M,) f32.  Returns (B,) int32 predicted class per sample."""
    B = x_nchw.shape[0]
    D = x_nchw.shape[1] * x_nchw.shape[2] * x_nchw.shape[3]
    MK = w_packed.shape[1]
    M = coeffs.shape[0]
    K = MK // M
    assert K <= 127, "int8 argmax output requires n_classes <= 127"

    x_flat = x_nchw.reshape(B, D)      # free metadata reshape; stays f32
    coeffs = coeffs.astype(jnp.float32)

    tile_b = _pick_tile_b(B, D)
    num_tiles = pl.cdiv(B, tile_b)
    padded_rows = num_tiles * tile_b   # padded output: no partial writebacks

    kernel = functools.partial(_majority_vote_kernel, n_models=M, n_classes=K)
    out = pl.pallas_call(
        kernel,
        grid=(num_tiles,),
        in_specs=[
            # coeffs: whole (M,) vector resident in SMEM across all steps.
            pl.BlockSpec(memory_space=pltpu.MemorySpace.SMEM),
            # x: pipelined batch tiles (prefetch i+1 while computing i).
            pl.BlockSpec((tile_b, D), lambda i: (i, 0)),
            # packed weights / bias: constant index_map -> VMEM-resident.
            pl.BlockSpec((D, MK), lambda i: (0, 0)),
            pl.BlockSpec((1, MK), lambda i: (0, 0)),
        ],
        out_specs=pl.BlockSpec((tile_b, _LANES), lambda i: (i, 0)),
        out_shape=jax.ShapeDtypeStruct((padded_rows, _LANES), jnp.int8),
        compiler_params=pltpu.CompilerParams(
            dimension_semantics=("parallel",),   # 2 TensorCores on v7x
            vmem_limit_bytes=32 * 1024 * 1024,   # explicit; safe on v5e/v6e/v7x
        ),
        cost_estimate=pl.CostEstimate(
            flops=2 * B * D * MK + 8 * B * MK,
            transcendentals=B * MK,
            bytes_accessed=(B * D * 4 + D * MK * 2 + MK * 4
                            + padded_rows * _LANES * 1),
        ),
    )(coeffs, x_flat, w_packed, b_packed)
    return out[:B, 0].astype(jnp.int32)


def majority_vote_reference(x_nchw, w_stack, b_stack, coeffs):
    # Mirrors the kernel's precision policy (bf16 matmul operands, f32 math,
    # single packed matmul) so the argmax comparison is apples-to-apples.
    B = x_nchw.shape[0]
    D = x_nchw.shape[1] * x_nchw.shape[2] * x_nchw.shape[3]
    M, _, K = w_stack.shape
    x_bf16 = x_nchw.reshape(B, D).astype(jnp.bfloat16)
    w_packed, b_packed = pack_ensemble(w_stack, b_stack)
    logits_all = jnp.dot(x_bf16, w_packed,
                         preferred_element_type=jnp.float32) + b_packed
    results = jnp.zeros((B, K), jnp.float32)
    for m in range(M):
        lg = logits_all[:, m * K:(m + 1) * K]
        results = results + jax.nn.softmax(lg, axis=-1) * coeffs[m]
        results = results + lg * coeffs[m]
    return jnp.argmax(results, axis=-1).astype(jnp.int32)


if __name__ == "__main__":
    B, C, H, W = 2, 4, 16, 16       # NCHW input, as in the PyTorch module
    n_classes = 8
    n_models = 3
    D = C * H * W

    key = jax.random.PRNGKey(0)
    kx, kw, kb = jax.random.split(key, 3)
    x = jax.random.normal(kx, (B, C, H, W), dtype=jnp.float32)
    w_stack = 0.05 * jax.random.normal(kw, (n_models, D, n_classes),
                                       dtype=jnp.float32)
    b_stack = 0.1 * jax.random.normal(kb, (n_models, 1, n_classes),
                                      dtype=jnp.float32)
    coeffs = jnp.array([1.0, 0.8, 0.6], dtype=jnp.float32)  # model weights

    # Weight packing done once, outside the per-call path (hoisted).
    w_packed, b_packed = pack_ensemble(w_stack, b_stack)

    pred = jax.block_until_ready(majority_vote(x, w_packed, b_packed, coeffs))
    ref = jax.block_until_ready(
        majority_vote_reference(x, w_stack, b_stack, coeffs))

    assert pred.shape == (B,)
    assert jnp.array_equal(pred, ref), (pred, ref)
    print("KERNEL_OK")
</pallas_src>

<mosaic_0001>
module attributes {stable_mosaic.version = 11 : i64} {
  func.func @_majority_vote_kernel(%arg0: i32, %arg1: memref<3xf32, #tpu.memory_space<smem>>, %arg2: memref<2x1024xf32, #tpu.memory_space<vmem>>, %arg3: memref<1024x24xbf16, #tpu.memory_space<vmem>>, %arg4: memref<1x24xf32, #tpu.memory_space<vmem>>, %arg5: memref<2x128xi8, #tpu.memory_space<vmem>>) attributes {dimension_semantics = [#tpu.dimension_semantics<parallel>], iteration_bounds = array<i64: 1>, scalar_prefetch = 0 : i64, scratch_operands = 0 : i64, tpu.core_type = #tpu.core_type<tc>, window_params = [{transform_indices = @transform_0, window_bounds = array<i64: 3>}, {transform_indices = @transform_1, window_bounds = array<i64: 2, 1024>}, {pipeline_mode = #tpu.pipeline_mode<synchronous>, transform_indices = @transform_2, window_bounds = array<i64: 1024, 24>}, {pipeline_mode = #tpu.pipeline_mode<synchronous>, transform_indices = @transform_3, window_bounds = array<i64: 1, 24>}, {transform_indices = @transform_4, window_bounds = array<i64: 2, 128>}]} {
    %c0 = arith.constant 0 : index
    %c0_0 = arith.constant 0 : index
    %0 = vector.load %arg2[%c0, %c0_0] : memref<2x1024xf32, #tpu.memory_space<vmem>>, vector<2x1024xf32>
    %1 = arith.truncf %0 : vector<2x1024xf32> to vector<2x1024xbf16>
    %c0_1 = arith.constant 0 : index
    %c0_2 = arith.constant 0 : index
    %2 = vector.load %arg3[%c0_1, %c0_2] : memref<1024x24xbf16, #tpu.memory_space<vmem>>, vector<1024x24xbf16>
    %cst = arith.constant dense<0.000000e+00> : vector<2x24xf32>
    %3 = tpu.matmul %1, %2, %cst {dimension_numbers = #tpu.dot_dimension_numbers<[1], [0], [0], [1], [0, 0, 1, 1], [], []>} : vector<2x1024xbf16>, vector<1024x24xbf16>, vector<2x24xf32> -> vector<2x24xf32>
    %c0_3 = arith.constant 0 : index
    %c0_4 = arith.constant 0 : index
    %4 = vector.load %arg4[%c0_3, %c0_4] : memref<1x24xf32, #tpu.memory_space<vmem>>, vector<1x24xf32>
    %5 = vector.broadcast %4 : vector<1x24xf32> to vector<2x24xf32>
    %6 = arith.addf %3, %5 : vector<2x24xf32>
    %cst_5 = arith.constant 0.000000e+00 : f32
    %7 = vector.broadcast %cst_5 : f32 to vector<2x8xf32>
    %8 = vector.extract_strided_slice %6 {offsets = [0, 0], sizes = [2, 8], strides = [1, 1]} : vector<2x24xf32> to vector<2x8xf32>
    %cst_6 = arith.constant dense<0xFF800000> : vector<2xf32>
    %9 = vector.multi_reduction <maximumf>, %8, %cst_6 [1] : vector<2x8xf32> to vector<2xf32>
    %10 = vector.shape_cast %9 : vector<2xf32> to vector<2x1xf32>
    %11 = vector.broadcast %10 : vector<2x1xf32> to vector<2x8xf32>
    %12 = arith.subf %8, %11 : vector<2x8xf32>
    %13 = math.exp %12 : vector<2x8xf32>
    %cst_7 = arith.constant dense<0.000000e+00> : vector<2xf32>
    %14 = vector.multi_reduction <add>, %13, %cst_7 [1] : vector<2x8xf32> to vector<2xf32>
    %15 = vector.shape_cast %14 : vector<2xf32> to vector<2x1xf32>
    %16 = vector.broadcast %15 : vector<2x1xf32> to vector<2x8xf32>
    %17 = arith.divf %13, %16 : vector<2x8xf32>
    %c0_8 = arith.constant 0 : index
    %18 = memref.load %arg1[%c0_8] : memref<3xf32, #tpu.memory_space<smem>>
    %19 = arith.addf %17, %8 : vector<2x8xf32>
    %20 = vector.broadcast %18 : f32 to vector<2x8xf32>
    %21 = arith.mulf %19, %20 : vector<2x8xf32>
    %22 = arith.addf %7, %21 : vector<2x8xf32>
    %23 = vector.extract_strided_slice %6 {offsets = [0, 8], sizes = [2, 8], strides = [1, 1]} : vector<2x24xf32> to vector<2x8xf32>
    %cst_9 = arith.constant dense<0xFF800000> : vector<2xf32>
    %24 = vector.multi_reduction <maximumf>, %23, %cst_9 [1] : vector<2x8xf32> to vector<2xf32>
    %25 = vector.shape_cast %24 : vector<2xf32> to vector<2x1xf32>
    %26 = vector.broadcast %25 : vector<2x1xf32> to vector<2x8xf32>
    %27 = arith.subf %23, %26 : vector<2x8xf32>
    %28 = math.exp %27 : vector<2x8xf32>
    %cst_10 = arith.constant dense<0.000000e+00> : vector<2xf32>
    %29 = vector.multi_reduction <add>, %28, %cst_10 [1] : vector<2x8xf32> to vector<2xf32>
    %30 = vector.shape_cast %29 : vector<2xf32> to vector<2x1xf32>
    %31 = vector.broadcast %30 : vector<2x1xf32> to vector<2x8xf32>
    %32 = arith.divf %28, %31 : vector<2x8xf32>
    %c1 = arith.constant 1 : index
    %33 = memref.load %arg1[%c1] : memref<3xf32, #tpu.memory_space<smem>>
    %34 = arith.addf %32, %23 : vector<2x8xf32>
    %35 = vector.broadcast %33 : f32 to vector<2x8xf32>
    %36 = arith.mulf %34, %35 : vector<2x8xf32>
    %37 = arith.addf %22, %36 : vector<2x8xf32>
    %38 = vector.extract_strided_slice %6 {offsets = [0, 16], sizes = [2, 8], strides = [1, 1]} : vector<2x24xf32> to vector<2x8xf32>
    %cst_11 = arith.constant dense<0xFF800000> : vector<2xf32>
    %39 = vector.multi_reduction <maximumf>, %38, %cst_11 [1] : vector<2x8xf32> to vector<2xf32>
    %40 = vector.shape_cast %39 : vector<2xf32> to vector<2x1xf32>
    %41 = vector.broadcast %40 : vector<2x1xf32> to vector<2x8xf32>
    %42 = arith.subf %38, %41 : vector<2x8xf32>
    %43 = math.exp %42 : vector<2x8xf32>
    %cst_12 = arith.constant dense<0.000000e+00> : vector<2xf32>
    %44 = vector.multi_reduction <add>, %43, %cst_12 [1] : vector<2x8xf32> to vector<2xf32>
    %45 = vector.shape_cast %44 : vector<2xf32> to vector<2x1xf32>
    %46 = vector.broadcast %45 : vector<2x1xf32> to vector<2x8xf32>
    %47 = arith.divf %43, %46 : vector<2x8xf32>
    %c2 = arith.constant 2 : index
    %48 = memref.load %arg1[%c2] : memref<3xf32, #tpu.memory_space<smem>>
    %49 = arith.addf %47, %38 : vector<2x8xf32>
    %50 = vector.broadcast %48 : f32 to vector<2x8xf32>
    %51 = arith.mulf %49, %50 : vector<2x8xf32>
    %52 = arith.addf %37, %51 : vector<2x8xf32>
    %cst_13 = arith.constant dense<0xFF800000> : vector<2xf32>
    %53 = vector.multi_reduction <maximumf>, %52, %cst_13 [1] : vector<2x8xf32> to vector<2xf32>
    %54 = vector.shape_cast %53 : vector<2xf32> to vector<2x1xf32>
    %55 = tpu.iota {dimensions = array<i32: 1>} : vector<2x8xi32>
    %56 = vector.broadcast %54 : vector<2x1xf32> to vector<2x8xf32>
    %57 = arith.cmpf oeq, %52, %56 : vector<2x8xf32>
    %c8_i32 = arith.constant 8 : i32
    %58 = vector.broadcast %c8_i32 : i32 to vector<2x8xi32>
    %59 = arith.select %57, %55, %58 : vector<2x8xi1>, vector<2x8xi32>
    %cst_14 = arith.constant dense<2147483647> : vector<2xi32>
    %60 = vector.multi_reduction <minsi>, %59, %cst_14 [1] : vector<2x8xi32> to vector<2xi32>
    %61 = vector.shape_cast %60 : vector<2xi32> to vector<2x1xi32>
    %62 = vector.shape_cast %61 : vector<2x1xi32> to vector<2x1xi32>
    %63 = vector.broadcast %62 : vector<2x1xi32> to vector<2x128xi32>
    %64 = arith.trunci %63 : vector<2x128xi32> to vector<2x128xi8>
    %c0_15 = arith.constant 0 : index
    %c0_16 = arith.constant 0 : index
    %65 = vector.load %arg5[%c0_15, %c0_16] : memref<2x128xi8, #tpu.memory_space<vmem>>, vector<2x128xi8>
    tpu.vector_store %arg5[%c0_15, %c0_16], %64 {strides = array<i32>} : memref<2x128xi8, #tpu.memory_space<vmem>>, vector<2x128xi8>,
    return
  }
  func.func @transform_0(%arg0: i32) -> i32 {
    %c0_i32 = arith.constant 0 : i32
    %c0_i32_0 = arith.constant 0 : i32
    return %c0_i32 : i32
  }
  func.func @transform_1(%arg0: i32) -> (i32, i32) {
    %c0_i32 = arith.constant 0 : i32
    %c0_i32_0 = arith.constant 0 : i32
    return %arg0, %c0_i32 : i32, i32
  }
  func.func @transform_2(%arg0: i32) -> (i32, i32) {
    %c0_i32 = arith.constant 0 : i32
    %c0_i32_0 = arith.constant 0 : i32
    %c0_i32_1 = arith.constant 0 : i32
    return %c0_i32, %c0_i32_0 : i32, i32
  }
  func.func @transform_3(%arg0: i32) -> (i32, i32) {
    %c0_i32 = arith.constant 0 : i32
    %c0_i32_0 = arith.constant 0 : i32
    %c0_i32_1 = arith.constant 0 : i32
    return %c0_i32, %c0_i32_0 : i32, i32
  }
  func.func @transform_4(%arg0: i32) -> (i32, i32) {
    %c0_i32 = arith.constant 0 : i32
    %c0_i32_0 = arith.constant 0 : i32
    return %arg0, %c0_i32 : i32, i32
  }
}

</mosaic_0001>

<llo_original>
// kernel: majority_vote.1
$region0: #{majority_vote.1}
  #allocation0 [shape = 'u32[]', space=smem, size = 0x4, offset = 0x4, fixed_abs, tag = 'smem constant byte address 0x4 - core index']
  #allocation1 [shape = 'u32[72,128]{1,0:T(1,128)}', space=vmem, size = 0x9000, scoped, tag = 'internal scratch']
  %s0 = inlined_call_operand.vmem [shape: f32[3], index: 0, kind: input, shape index: {}]
  %s1 = inlined_call_operand.vmem [shape: f32[2,1024], index: 1, kind: input, shape index: {}]
  %s2 = inlined_call_operand.vmem [shape: bf16[1024,24], index: 2, kind: input, shape index: {}]
  %s3 = inlined_call_operand.vmem [shape: f32[1,24], index: 3, kind: input, shape index: {}]
  %s4 = inlined_call_operand.vmem [shape: s8[2,128], index: 4, kind: output, shape index: {}]
  %s5 = sld [smem:[#allocation0]]
  $region30: #{majority_vote.1} parent=0
    _
  %s7 = ssub.s32 1, %s5
  %s8 = scalar_select 0, %s7, %s5
  $region1: #{majority_vote.1} parent=0
    #allocation2 [shape = 'u8[512]{0}', space=smem, size = 0x200, scoped, tag = 'input window, operand 0, single buffered']
    #allocation3 [shape = 's32[1]{0}', space=sflag, size = 0x4, scoped, tag = 'scoped memory for majority_vote.1']
    %9 = vsyncpa [#allocation3], 0
    // Predicated region
    $region2: #{majority_vote.1} parent=1 // pred_check
      _
    $region3: #{majority_vote.1} parent=1 // pred_check_branch
      %11 = sbr.rel (0) target = $region5
    $region4: #{majority_vote.1} parent=1 // pred_region
      %13 = vsyncadd [#allocation3], 0
      %s15 = sshll.u32 %s0, 4
      %s16 = int_to_ptr.vmem [resolvable:$true] %s15
      %18 = dma.vmem_to_smem %s16, 16, [#allocation2], [#allocation3]
    $region5: #{majority_vote.1} parent=1 // pred_fallthru
      _
    // Predicated region
    $region6: #{majority_vote.1} parent=1 // pred_check
      _
    $region7: #{majority_vote.1} parent=1 // pred_check_branch
      %20 = sbr.rel (0) target = $region9
    $region8: #{majority_vote.1} parent=1 // pred_region
      _
    $region9: #{majority_vote.1} parent=1 // pred_fallthru
      _
    // Predicated region
    $region10: #{majority_vote.1} parent=1 // pred_check
      _
    $region11: #{majority_vote.1} parent=1 // pred_check_branch
      %22 = sbr.rel (0) target = $region13
    $region12: #{majority_vote.1} parent=1 // pred_region
      _
    $region13: #{majority_vote.1} parent=1 // pred_fallthru
      _
    // Predicated region
    $region14: #{majority_vote.1} parent=1 // pred_check
      _
    $region15: #{majority_vote.1} parent=1 // pred_check_branch
      %24 = sbr.rel (0) target = $region17
    $region16: #{majority_vote.1} parent=1 // pred_region
      _
    $region17: #{majority_vote.1} parent=1 // pred_fallthru
      _
    // Predicated region
    $region18: #{majority_vote.1} parent=1 // pred_check
      _
    $region19: #{majority_vote.1} parent=1 // pred_check_branch
      %26 = sbr.rel (0) target = $region21
    $region20: #{majority_vote.1} parent=1 // pred_region
      %28 = dma.done [#allocation3], 16
    $region21: #{majority_vote.1} parent=1 // pred_fallthru
      _
    %29 = sfence
    %v30 = vld [vmem:[%s1] sm:$0xff]
    %v31 = vld [vmem:[%s1 + $0x8] sm:$0xff]
    %34 = vst [vmem:[#allocation1] ss:$4 sm:$0xff] %v30
    %s35 = scalar_lea.vmem [#allocation1], 32
    %36 = vst [vmem:[%s35] ss:$4 sm:$0xff] %v31
    %v37 = vld.sshfl [vmem:[#allocation1] sm:$0xff pattern:$0x73625140]
    %v38 = vld.sshfl [vmem:[#allocation1 + $0x8] sm:$0xff pattern:$0x73625140]
    %v39 = vld.sshfl [vmem:[#allocation1 + $0x10] sm:$0xff pattern:$0x73625140]
    %v40 = vld.sshfl [vmem:[#allocation1 + $0x18] sm:$0xff pattern:$0x73625140]
    %v41 = vld.sshfl [vmem:[#allocation1 + $0x20] sm:$0xff pattern:$0x73625140]
    %v42 = vld.sshfl [vmem:[#allocation1 + $0x28] sm:$0xff pattern:$0x73625140]
    %v43 = vld.sshfl [vmem:[#allocation1 + $0x30] sm:$0xff pattern:$0x73625140]
    %v44 = vld.sshfl [vmem:[#allocation1 + $0x38] sm:$0xff pattern:$0x73625140]
    %v53 = vpack.c.bf16 %v37, %v37
    %v54 = vpack.c.bf16 %v38, %v38
    %v55 = vpack.c.bf16 %v39, %v39
    %v56 = vpack.c.bf16 %v40, %v40
    %v57 = vpack.c.bf16 %v41, %v41
    %v58 = vpack.c.bf16 %v42, %v42
    %v59 = vpack.c.bf16 %v43, %v43
    %v60 = vpack.c.bf16 %v44, %v44
    %v61 = vld [vmem:[%s2] sm:$0xf]
    %v62 = vld [vmem:[%s2 + $0x4] sm:$0xf]
    %v63 = vld [vmem:[%s2 + $0x8] sm:$0xf]
    %v64 = vld [vmem:[%s2 + $0xc] sm:$0xf]
    %v65 = vld [vmem:[%s2 + $0x10] sm:$0xf]
    %v66 = vld [vmem:[%s2 + $0x14] sm:$0xf]
    %v67 = vld [vmem:[%s2 + $0x18] sm:$0xf]
    %v68 = vld [vmem:[%s2 + $0x1c] sm:$0xf]
    %v69 = vld [vmem:[%s2 + $0x20] sm:$0xf]
    %v70 = vld [vmem:[%s2 + $0x24] sm:$0xf]
    %v71 = vld [vmem:[%s2 + $0x28] sm:$0xf]
    %v72 = vld [vmem:[%s2 + $0x2c] sm:$0xf]
    %v73 = vld [vmem:[%s2 + $0x30] sm:$0xf]
    %v74 = vld [vmem:[%s2 + $0x34] sm:$0xf]
    %v75 = vld [vmem:[%s2 + $0x38] sm:$0xf]
    %v76 = vld [vmem:[%s2 + $0x3c] sm:$0xf]
    %v77 = vld [vmem:[%s2 + $0x40] sm:$0xf]
    %v78 = vld [vmem:[%s2 + $0x44] sm:$0xf]
    %v79 = vld [vmem:[%s2 + $0x48] sm:$0xf]
    %v80 = vld [vmem:[%s2 + $0x4c] sm:$0xf]
    %v81 = vld [vmem:[%s2 + $0x50] sm:$0xf]
    %v82 = vld [vmem:[%s2 + $0x54] sm:$0xf]
    %v83 = vld [vmem:[%s2 + $0x58] sm:$0xf]
    %v84 = vld [vmem:[%s2 + $0x5c] sm:$0xf]
    %v85 = vld [vmem:[%s2 + $0x60] sm:$0xf]
    %v86 = vld [vmem:[%s2 + $0x64] sm:$0xf]
    %v87 = vld [vmem:[%s2 + $0x68] sm:$0xf]
    %v88 = vld [vmem:[%s2 + $0x6c] sm:$0xf]
    %v89 = vld [vmem:[%s2 + $0x70] sm:$0xf]
    %v90 = vld [vmem:[%s2 + $0x74] sm:$0xf]
    %v91 = vld [vmem:[%s2 + $0x78] sm:$0xf]
    %v92 = vld [vmem:[%s2 + $0x7c] sm:$0xf]
    %v93 = vld [vmem:[%s2 + $0x80] sm:$0xf]
    %v94 = vld [vmem:[%s2 + $0x84] sm:$0xf]
    %v95 = vld [vmem:[%s2 + $0x88] sm:$0xf]
    %v96 = vld [vmem:[%s2 + $0x8c] sm:$0xf]
    %v97 = vld [vmem:[%s2 + $0x90] sm:$0xf]
    %v98 = vld [vmem:[%s2 + $0x94] sm:$0xf]
    %v99 = vld [vmem:[%s2 + $0x98] sm:$0xf]
    %v100 = vld [vmem:[%s2 + $0x9c] sm:$0xf]
    %v101 = vld [vmem:[%s2 + $0xa0] sm:$0xf]
    %v102 = vld [vmem:[%s2 + $0xa4] sm:$0xf]
    %v103 = vld [vmem:[%s2 + $0xa8] sm:$0xf]
    %v104 = vld [vmem:[%s2 + $0xac] sm:$0xf]
    %v105 = vld [vmem:[%s2 + $0xb0] sm:$0xf]
    %v106 = vld [vmem:[%s2 + $0xb4] sm:$0xf]
    %v107 = vld [vmem:[%s2 + $0xb8] sm:$0xf]
    %v108 = vld [vmem:[%s2 + $0xbc] sm:$0xf]
    %v109 = vld [vmem:[%s2 + $0xc0] sm:$0xf]
    %v110 = vld [vmem:[%s2 + $0xc4] sm:$0xf]
    %v111 = vld [vmem:[%s2 + $0xc8] sm:$0xf]
    %v112 = vld [vmem:[%s2 + $0xcc] sm:$0xf]
    %v113 = vld [vmem:[%s2 + $0xd0] sm:$0xf]
    %v114 = vld [vmem:[%s2 + $0xd4] sm:$0xf]
    %v115 = vld [vmem:[%s2 + $0xd8] sm:$0xf]
    %v116 = vld [vmem:[%s2 + $0xdc] sm:$0xf]
    %v117 = vld [vmem:[%s2 + $0xe0] sm:$0xf]
    %v118 = vld [vmem:[%s2 + $0xe4] sm:$0xf]
    %v119 = vld [vmem:[%s2 + $0xe8] sm:$0xf]
    %v120 = vld [vmem:[%s2 + $0xec] sm:$0xf]
    %v121 = vld [vmem:[%s2 + $0xf0] sm:$0xf]
    %v122 = vld [vmem:[%s2 + $0xf4] sm:$0xf]
    %v123 = vld [vmem:[%s2 + $0xf8] sm:$0xf]
    %v124 = vld [vmem:[%s2 + $0xfc] sm:$0xf]
    %v125 = vld [vmem:[%s2 + $0x100] sm:$0xf]
    %v126 = vld [vmem:[%s2 + $0x104] sm:$0xf]
    %v127 = vld [vmem:[%s2 + $0x108] sm:$0xf]
    %v128 = vld [vmem:[%s2 + $0x10c] sm:$0xf]
    %v129 = vld [vmem:[%s2 + $0x110] sm:$0xf]
    %v130 = vld [vmem:[%s2 + $0x114] sm:$0xf]
    %v131 = vld [vmem:[%s2 + $0x118] sm:$0xf]
    %v132 = vld [vmem:[%s2 + $0x11c] sm:$0xf]
    %v133 = vld [vmem:[%s2 + $0x120] sm:$0xf]
    %v134 = vld [vmem:[%s2 + $0x124] sm:$0xf]
    %v135 = vld [vmem:[%s2 + $0x128] sm:$0xf]
    %v136 = vld [vmem:[%s2 + $0x12c] sm:$0xf]
    %v137 = vld [vmem:[%s2 + $0x130] sm:$0xf]
    %v138 = vld [vmem:[%s2 + $0x134] sm:$0xf]
    %v139 = vld [vmem:[%s2 + $0x138] sm:$0xf]
    %v140 = vld [vmem:[%s2 + $0x13c] sm:$0xf]
    %v141 = vld [vmem:[%s2 + $0x140] sm:$0xf]
    %v142 = vld [vmem:[%s2 + $0x144] sm:$0xf]
    %v143 = vld [vmem:[%s2 + $0x148] sm:$0xf]
    %v144 = vld [vmem:[%s2 + $0x14c] sm:$0xf]
    %v145 = vld [vmem:[%s2 + $0x150] sm:$0xf]
    %v146 = vld [vmem:[%s2 + $0x154] sm:$0xf]
    %v147 = vld [vmem:[%s2 + $0x158] sm:$0xf]
    %v148 = vld [vmem:[%s2 + $0x15c] sm:$0xf]
    %v149 = vld [vmem:[%s2 + $0x160] sm:$0xf]
    %v150 = vld [vmem:[%s2 + $0x164] sm:$0xf]
    %v151 = vld [vmem:[%s2 + $0x168] sm:$0xf]
    %v152 = vld [vmem:[%s2 + $0x16c] sm:$0xf]
    %v153 = vld [vmem:[%s2 + $0x170] sm:$0xf]
    %v154 = vld [vmem:[%s2 + $0x174] sm:$0xf]
    %v155 = vld [vmem:[%s2 + $0x178] sm:$0xf]
    %v156 = vld [vmem:[%s2 + $0x17c] sm:$0xf]
    %v157 = vld [vmem:[%s2 + $0x180] sm:$0xf]
    %v158 = vld [vmem:[%s2 + $0x184] sm:$0xf]
    %v159 = vld [vmem:[%s2 + $0x188] sm:$0xf]
    %v160 = vld [vmem:[%s2 + $0x18c] sm:$0xf]
    %v161 = vld [vmem:[%s2 + $0x190] sm:$0xf]
    %v162 = vld [vmem:[%s2 + $0x194] sm:$0xf]
    %v163 = vld [vmem:[%s2 + $0x198] sm:$0xf]
    %v164 = vld [vmem:[%s2 + $0x19c] sm:$0xf]
    %v165 = vld [vmem:[%s2 + $0x1a0] sm:$0xf]
    %v166 = vld [vmem:[%s2 + $0x1a4] sm:$0xf]
    %v167 = vld [vmem:[%s2 + $0x1a8] sm:$0xf]
    %v168 = vld [vmem:[%s2 + $0x1ac] sm:$0xf]
    %v169 = vld [vmem:[%s2 + $0x1b0] sm:$0xf]
    %v170 = vld [vmem:[%s2 + $0x1b4] sm:$0xf]
    %v171 = vld [vmem:[%s2 + $0x1b8] sm:$0xf]
    %v172 = vld [vmem:[%s2 + $0x1bc] sm:$0xf]
    %v173 = vld [vmem:[%s2 + $0x1c0] sm:$0xf]
    %v174 = vld [vmem:[%s2 + $0x1c4] sm:$0xf]
    %v175 = vld [vmem:[%s2 + $0x1c8] sm:$0xf]
    %v176 = vld [vmem:[%s2 + $0x1cc] sm:$0xf]
    %v177 = vld [vmem:[%s2 + $0x1d0] sm:$0xf]
    %v178 = vld [vmem:[%s2 + $0x1d4] sm:$0xf]
    %v179 = vld [vmem:[%s2 + $0x1d8] sm:$0xf]
    %v180 = vld [vmem:[%s2 + $0x1dc] sm:$0xf]
    %v181 = vld [vmem:[%s2 + $0x1e0] sm:$0xf]
    %v182 = vld [vmem:[%s2 + $0x1e4] sm:$0xf]
    %v183 = vld [vmem:[%s2 + $0x1e8] sm:$0xf]
    %v184 = vld [vmem:[%s2 + $0x1ec] sm:$0xf]
    %v185 = vld [vmem:[%s2 + $0x1f0] sm:$0xf]
    %v186 = vld [vmem:[%s2 + $0x1f4] sm:$0xf]
    %v187 = vld [vmem:[%s2 + $0x1f8] sm:$0xf]
    %v188 = vld [vmem:[%s2 + $0x1fc] sm:$0xf]
    %v189 = vld [vmem:[%s3] sm:$0x1]
    %v191 = vperm.slane %v189, 0
    %v321 = vunpack.c.l.b16 %v61
    %v322 = vunpack.c.l.b16 %v62
    %v323 = vunpack.c.l.b16 %v63
    %v324 = vunpack.c.l.b16 %v64
    %v325 = vunpack.c.l.b16 %v65
    %v326 = vunpack.c.l.b16 %v66
    %v327 = vunpack.c.l.b16 %v67
    %v328 = vunpack.c.l.b16 %v68
    %v329 = vunpack.c.l.b16 %v69
    %v330 = vunpack.c.l.b16 %v70
    %v331 = vunpack.c.l.b16 %v71
    %v332 = vunpack.c.l.b16 %v72
    %v333 = vunpack.c.l.b16 %v73
    %v334 = vunpack.c.l.b16 %v74
    %v335 = vunpack.c.l.b16 %v75
    %v336 = vunpack.c.l.b16 %v76
    %v337 = vunpack.c.l.b16 %v77
    %v338 = vunpack.c.l.b16 %v78
    %v339 = vunpack.c.l.b16 %v79
    %v340 = vunpack.c.l.b16 %v80
    %v341 = vunpack.c.l.b16 %v81
    %v342 = vunpack.c.l.b16 %v82
    %v343 = vunpack.c.l.b16 %v83
    %v344 = vunpack.c.l.b16 %v84
    %v345 = vunpack.c.l.b16 %v85
    %v346 = vunpack.c.l.b16 %v86
    %v347 = vunpack.c.l.b16 %v87
    %v348 = vunpack.c.l.b16 %v88
    %v349 = vunpack.c.l.b16 %v89
    %v350 = vunpack.c.l.b16 %v90
    %v351 = vunpack.c.l.b16 %v91
    %v352 = vunpack.c.l.b16 %v92
    %v353 = vunpack.c.l.b16 %v93
    %v354 = vunpack.c.l.b16 %v94
    %v355 = vunpack.c.l.b16 %v95
    %v356 = vunpack.c.l.b16 %v96
    %v357 = vunpack.c.l.b16 %v97
    %v358 = vunpack.c.l.b16 %v98
    %v359 = vunpack.c.l.b16 %v99
    %v360 = vunpack.c.l.b16 %v100
    %v361 = vunpack.c.l.b16 %v101
    %v362 = vunpack.c.l.b16 %v102
    %v363 = vunpack.c.l.b16 %v103
    %v364 = vunpack.c.l.b16 %v104
    %v365 = vunpack.c.l.b16 %v105
    %v366 = vunpack.c.l.b16 %v106
    %v367 = vunpack.c.l.b16 %v107
    %v368 = vunpack.c.l.b16 %v108
    %v369 = vunpack.c.l.b16 %v109
    %v370 = vunpack.c.l.b16 %v110
    %v371 = vunpack.c.l.b16 %v111
    %v372 = vunpack.c.l.b16 %v112
    %v373 = vunpack.c.l.b16 %v113
    %v374 = vunpack.c.l.b16 %v114
    %v375 = vunpack.c.l.b16 %v115
    %v376 = vunpack.c.l.b16 %v116
    %v377 = vunpack.c.l.b16 %v117
    %v378 = vunpack.c.l.b16 %v118
    %v379 = vunpack.c.l.b16 %v119
    %v380 = vunpack.c.l.b16 %v120
    %v381 = vunpack.c.l.b16 %v121
    %v382 = vunpack.c.l.b16 %v122
    %v383 = vunpack.c.l.b16 %v123
    %v384 = vunpack.c.l.b16 %v124
    %v385 = vunpack.c.l.b16 %v125
    %v386 = vunpack.c.l.b16 %v126
    %v387 = vunpack.c.l.b16 %v127
    %v388 = vunpack.c.l.b16 %v128
    %v389 = vunpack.c.l.b16 %v129
    %v390 = vunpack.c.l.b16 %v130
    %v391 = vunpack.c.l.b16 %v131
    %v392 = vunpack.c.l.b16 %v132
    %v393 = vunpack.c.l.b16 %v133
    %v394 = vunpack.c.l.b16 %v134
    %v395 = vunpack.c.l.b16 %v135
    %v396 = vunpack.c.l.b16 %v136
    %v397 = vunpack.c.l.b16 %v137
    %v398 = vunpack.c.l.b16 %v138
    %v399 = vunpack.c.l.b16 %v139
    %v400 = vunpack.c.l.b16 %v140
    %v401 = vunpack.c.l.b16 %v141
    %v402 = vunpack.c.l.b16 %v142
    %v403 = vunpack.c.l.b16 %v143
    %v404 = vunpack.c.l.b16 %v144
    %v405 = vunpack.c.l.b16 %v145
    %v406 = vunpack.c.l.b16 %v146
    %v407 = vunpack.c.l.b16 %v147
    %v408 = vunpack.c.l.b16 %v148
    %v409 = vunpack.c.l.b16 %v149
    %v410 = vunpack.c.l.b16 %v150
    %v411 = vunpack.c.l.b16 %v151
    %v412 = vunpack.c.l.b16 %v152
    %v413 = vunpack.c.l.b16 %v153
    %v414 = vunpack.c.l.b16 %v154
    %v415 = vunpack.c.l.b16 %v155
    %v416 = vunpack.c.l.b16 %v156
    %v417 = vunpack.c.l.b16 %v157
    %v418 = vunpack.c.l.b16 %v158
    %v419 = vunpack.c.l.b16 %v159
    %v420 = vunpack.c.l.b16 %v160
    %v421 = vunpack.c.l.b16 %v161
    %v422 = vunpack.c.l.b16 %v162
    %v423 = vunpack.c.l.b16 %v163
    %v424 = vunpack.c.l.b16 %v164
    %v425 = vunpack.c.l.b16 %v165
    %v426 = vunpack.c.l.b16 %v166
    %v427 = vunpack.c.l.b16 %v167
    %v428 = vunpack.c.l.b16 %v168
    %v429 = vunpack.c.l.b16 %v169
    %v430 = vunpack.c.l.b16 %v170
    %v431 = vunpack.c.l.b16 %v171
    %v432 = vunpack.c.l.b16 %v172
    %v433 = vunpack.c.l.b16 %v173
    %v434 = vunpack.c.l.b16 %v174
    %v435 = vunpack.c.l.b16 %v175
    %v436 = vunpack.c.l.b16 %v176
    %v437 = vunpack.c.l.b16 %v177
    %v438 = vunpack.c.l.b16 %v178
    %v439 = vunpack.c.l.b16 %v179
    %v440 = vunpack.c.l.b16 %v180
    %v441 = vunpack.c.l.b16 %v181
    %v442 = vunpack.c.l.b16 %v182
    %v443 = vunpack.c.l.b16 %v183
    %v444 = vunpack.c.l.b16 %v184
    %v445 = vunpack.c.l.b16 %v185
    %v446 = vunpack.c.l.b16 %v186
    %v447 = vunpack.c.l.b16 %v187
    %v448 = vunpack.c.l.b16 %v188
    %v449 = vpack.c.b16 %v322, %v321
    %v450 = vpack.c.b16 %v324, %v323
    %v451 = vpack.c.b16 %v326, %v325
    %v452 = vpack.c.b16 %v328, %v327
    %v453 = vpack.c.b16 %v330, %v329
    %v454 = vpack.c.b16 %v332, %v331
    %v455 = vpack.c.b16 %v334, %v333
    %v456 = vpack.c.b16 %v336, %v335
    %v457 = vpack.c.b16 %v338, %v337
    %v458 = vpack.c.b16 %v340, %v339
    %v459 = vpack.c.b16 %v342, %v341
    %v460 = vpack.c.b16 %v344, %v343
    %v461 = vpack.c.b16 %v346, %v345
    %v462 = vpack.c.b16 %v348, %v347
    %v463 = vpack.c.b16 %v350, %v349
    %v464 = vpack.c.b16 %v352, %v351
    %v465 = vpack.c.b16 %v354, %v353
    %v466 = vpack.c.b16 %v356, %v355
    %v467 = vpack.c.b16 %v358, %v357
    %v468 = vpack.c.b16 %v360, %v359
    %v469 = vpack.c.b16 %v362, %v361
    %v470 = vpack.c.b16 %v364, %v363
    %v471 = vpack.c.b16 %v366, %v365
    %v472 = vpack.c.b16 %v368, %v367
    %v473 = vpack.c.b16 %v370, %v369
    %v474 = vpack.c.b16 %v372, %v371
    %v475 = vpack.c.b16 %v374, %v373
    %v476 = vpack.c.b16 %v376, %v375
    %v477 = vpack.c.b16 %v378, %v377
    %v478 = vpack.c.b16 %v380, %v379
    %v479 = vpack.c.b16 %v382, %v381
    %v480 = vpack.c.b16 %v384, %v383
    %v481 = vpack.c.b16 %v386, %v385
    %v482 = vpack.c.b16 %v388, %v387
    %v483 = vpack.c.b16 %v390, %v389
    %v484 = vpack.c.b16 %v392, %v391
    %v485 = vpack.c.b16 %v394, %v393
    %v486 = vpack.c.b16 %v396, %v395
    %v487 = vpack.c.b16 %v398, %v397
    %v488 = vpack.c.b16 %v400, %v399
    %v489 = vpack.c.b16 %v402, %v401
    %v490 = vpack.c.b16 %v404, %v403
    %v491 = vpack.c.b16 %v406, %v405
    %v492 = vpack.c.b16 %v408, %v407
    %v493 = vpack.c.b16 %v410, %v409
    %v494 = vpack.c.b16 %v412, %v411
    %v495 = vpack.c.b16 %v414, %v413
    %v496 = vpack.c.b16 %v416, %v415
    %v497 = vpack.c.b16 %v418, %v417
    %v498 = vpack.c.b16 %v420, %v419
    %v499 = vpack.c.b16 %v422, %v421
    %v500 = vpack.c.b16 %v424, %v423
    %v501 = vpack.c.b16 %v426, %v425
    %v502 = vpack.c.b16 %v428, %v427
    %v503 = vpack.c.b16 %v430, %v429
    %v504 = vpack.c.b16 %v432, %v431
    %v505 = vpack.c.b16 %v434, %v433
    %v506 = vpack.c.b16 %v436, %v435
    %v507 = vpack.c.b16 %v438, %v437
    %v508 = vpack.c.b16 %v440, %v439
    %v509 = vpack.c.b16 %v442, %v441
    %v510 = vpack.c.b16 %v444, %v443
    %v511 = vpack.c.b16 %v446, %v445
    %v512 = vpack.c.b16 %v448, %v447
    %577 = vmatpush.bf16.msra.mxu0 %v456
    %578 = vmatpush.bf16.msra.mxu0 %v455
    %579 = vmatpush.bf16.msra.mxu0 %v454
    %580 = vmatpush.bf16.msra.mxu0 %v453
    %581 = vmatpush.bf16.msra.mxu0 %v452
    %582 = vmatpush.bf16.msra.mxu0 %v451
    %583 = vmatpush.bf16.msra.mxu0 %v450
    %584 = vmatpush.bf16.msra.mxu0 %v449
    %585 = vmatmul.bf16.gmra.mxu0 %v53
    %v586 = vpop.f32.mrf.mxu0
    %v587 = vadd.f32 %v191, %v586
    %v588 = vpop.f32.mrf.mxu0
    %589 = vdwg.mxu0
    %590 = vmatpush.bf16.msra.mxu0 %v464
    %591 = vmatpush.bf16.msra.mxu0 %v463
    %592 = vmatpush.bf16.msra.mxu0 %v462
    %593 = vmatpush.bf16.msra.mxu0 %v461
    %594 = vmatpush.bf16.msra.mxu0 %v460
    %595 = vmatpush.bf16.msra.mxu0 %v459
    %596 = vmatpush.bf16.msra.mxu0 %v458
    %597 = vmatpush.bf16.msra.mxu0 %v457
    %598 = vmatmul.bf16.gmra.mxu0 %v54
    %v599 = vpop.f32.mrf.mxu0
    %v600 = vadd.f32 %v587, %v599
    %v601 = vpop.f32.mrf.mxu0
    %602 = vdwg.mxu0
    %603 = vmatpush.bf16.msra.mxu0 %v472
    %604 = vmatpush.bf16.msra.mxu0 %v471
    %605 = vmatpush.bf16.msra.mxu0 %v470
    %606 = vmatpush.bf16.msra.mxu0 %v469
    %607 = vmatpush.bf16.msra.mxu0 %v468
    %608 = vmatpush.bf16.msra.mxu0 %v467
    %609 = vmatpush.bf16.msra.mxu0 %v466
    %610 = vmatpush.bf16.msra.mxu0 %v465
    %611 = vmatmul.bf16.gmra.mxu0 %v55
    %v612 = vpop.f32.mrf.mxu0
    %v613 = vadd.f32 %v600, %v612
    %v614 = vpop.f32.mrf.mxu0
    %615 = vdwg.mxu0
    %616 = vmatpush.bf16.msra.mxu0 %v480
    %617 = vmatpush.bf16.msra.mxu0 %v479
    %618 = vmatpush.bf16.msra.mxu0 %v478
    %619 = vmatpush.bf16.msra.mxu0 %v477
    %620 = vmatpush.bf16.msra.mxu0 %v476
    %621 = vmatpush.bf16.msra.mxu0 %v475
    %622 = vmatpush.bf16.msra.mxu0 %v474
    %623 = vmatpush.bf16.msra.mxu0 %v473
    %624 = vmatmul.bf16.gmra.mxu0 %v56
    %v625 = vpop.f32.mrf.mxu0
    %v626 = vadd.f32 %v613, %v625
    %v627 = vpop.f32.mrf.mxu0
    %628 = vdwg.mxu0
    %629 = vmatpush.bf16.msra.mxu0 %v488
    %630 = vmatpush.bf16.msra.mxu0 %v487
    %631 = vmatpush.bf16.msra.mxu0 %v486
    %632 = vmatpush.bf16.msra.mxu0 %v485
    %633 = vmatpush.bf16.msra.mxu0 %v484
    %634 = vmatpush.bf16.msra.mxu0 %v483
    %635 = vmatpush.bf16.msra.mxu0 %v482
    %636 = vmatpush.bf16.msra.mxu0 %v481
    %637 = vmatmul.bf16.gmra.mxu0 %v57
    %v638 = vpop.f32.mrf.mxu0
    %v639 = vadd.f32 %v626, %v638
    %v640 = vpop.f32.mrf.mxu0
    %641 = vdwg.mxu0
    %642 = vmatpush.bf16.msra.mxu0 %v496
    %643 = vmatpush.bf16.msra.mxu0 %v495
    %644 = vmatpush.bf16.msra.mxu0 %v494
    %645 = vmatpush.bf16.msra.mxu0 %v493
    %646 = vmatpush.bf16.msra.mxu0 %v492
    %647 = vmatpush.bf16.msra.mxu0 %v491
    %648 = vmatpush.bf16.msra.mxu0 %v490
    %649 = vmatpush.bf16.msra.mxu0 %v489
    %650 = vmatmul.bf16.gmra.mxu0 %v58
    %v651 = vpop.f32.mrf.mxu0
    %v652 = vadd.f32 %v639, %v651
    %v653 = vpop.f32.mrf.mxu0
    %654 = vdwg.mxu0
    %655 = vmatpush.bf16.msra.mxu0 %v504
    %656 = vmatpush.bf16.msra.mxu0 %v503
    %657 = vmatpush.bf16.msra.mxu0 %v502
    %658 = vmatpush.bf16.msra.mxu0 %v501
    %659 = vmatpush.bf16.msra.mxu0 %v500
    %660 = vmatpush.bf16.msra.mxu0 %v499
    %661 = vmatpush.bf16.msra.mxu0 %v498
    %662 = vmatpush.bf16.msra.mxu0 %v497
    %663 = vmatmul.bf16.gmra.mxu0 %v59
    %v664 = vpop.f32.mrf.mxu0
    %v665 = vadd.f32 %v652, %v664
    %v666 = vpop.f32.mrf.mxu0
    %667 = vdwg.mxu0
    %668 = vmatpush.bf16.msra.mxu0 %v512
    %669 = vmatpush.bf16.msra.mxu0 %v511
    %670 = vmatpush.bf16.msra.mxu0 %v510
    %671 = vmatpush.bf16.msra.mxu0 %v509
    %672 = vmatpush.bf16.msra.mxu0 %v508
    %673 = vmatpush.bf16.msra.mxu0 %v507
    %674 = vmatpush.bf16.msra.mxu0 %v506
    %675 = vmatpush.bf16.msra.mxu0 %v505
    %676 = vmatmul.bf16.gmra.mxu0 %v60
    %v677 = vpop.f32.mrf.mxu0
    %v678 = vadd.f32 %v665, %v677
    %v679 = vpop.f32.mrf.mxu0
    %680 = vdwg.mxu0
    %vm681 = vcmask 58368
    %v682 = vsel %vm681, %v678, -inf
    %683 = vmax.xlane.f32.xlu0 %v682
    %v684 = vpop.xlane.xlu0 %683
    %v685 = vsub.f32 %v678, %v684
    %v686 = vmul.f32 %v685, 1.442695
    %v687 = vpow.pop %v686
    %v688 = vsel %vm681, %v687, 0.0
    %689 = vadd.xlane.f32.xlu0 %v688
    %v690 = vpop.xlane.xlu0 %689
    %v691 = vrcp.pop %v690
    %v692 = vmul.f32 %v690, %v691
    %v693 = vsub.f32 1.0, %v692
    %v694 = vmul.f32 %v691, %v693
    %v695 = vadd.f32 %v691, %v694
    %vm696 = vweird.f32 %v690
    %vm697 = vweird.f32 %v691
    %vm698 = vmor %vm696, %vm697
    %v699 = vsel %vm698, %v691, %v695
    %v700 = vand.u32 2147483647, %v690
    %vm701 = vcmp.eq.f32.partialorder %v700, 8.507059e+37
    %v702 = vand.u32 %v690, 2147483648
    %v703 = vor.u32 1.1754944e-38, %v702
    %v704 = vsel %vm701, %v703, %v699
    %v705 = vmul.f32 %v687, %v704
    %s706 = sld [smem:[#allocation2]]
    %v707 = vadd.f32 %v705, %v678
    %v708 = vstv %s706
    %v709 = vmul.f32 %v707, %v708
    %v710 = vadd.f32 %v709, 0.0
    %vm711 = vcmask 123968
    %v712 = vsel %vm711, %v678, -inf
    %713 = vmax.xlane.f32.xlu0 %v712
    %v714 = vpop.xlane.xlu0 %713
    %v715 = vsub.f32 %v678, %v714
    %v716 = vmul.f32 %v715, 1.442695
    %v717 = vpow.pop %v716
    %719 = vrot.lane.b32.xlu0 %v717, 120
    %v720 = vpop.permute.xlu0 %719
    %v722 = vsel %vm681, %v720, 0.0
    %723 = vadd.xlane.f32.xlu0 %v722
    %v724 = vpop.xlane.xlu0 %723
    %v725 = vrcp.pop %v724
    %v726 = vmul.f32 %v724, %v725
    %v727 = vsub.f32 1.0, %v726
    %v728 = vmul.f32 %v725, %v727
    %v729 = vadd.f32 %v725, %v728
    %vm730 = vweird.f32 %v724
    %vm731 = vweird.f32 %v725
    %vm732 = vmor %vm730, %vm731
    %v733 = vsel %vm732, %v725, %v729
    %v734 = vand.u32 2147483647, %v724
    %vm735 = vcmp.eq.f32.partialorder %v734, 8.507059e+37
    %v736 = vand.u32 %v724, 2147483648
    %v737 = vor.u32 1.1754944e-38, %v736
    %v738 = vsel %vm735, %v737, %v733
    %v739 = vmul.f32 %v717, %v738
    %s740 = sld [smem:[#allocation2 + $0x1]]
    %v741 = vadd.f32 %v739, %v678
    %v742 = vstv %s740
    %v743 = vmul.f32 %v741, %v742
    %745 = vrot.lane.b32.xlu0 %v743, 120
    %v746 = vpop.permute.xlu0 %745
    %v748 = vadd.f32 %v710, %v746
    %vm749 = vcmask 189568
    %v750 = vsel %vm749, %v678, -inf
    %751 = vmax.xlane.f32.xlu0 %v750
    %v752 = vpop.xlane.xlu0 %751
    %v753 = vsub.f32 %v678, %v752
    %v754 = vmul.f32 %v753, 1.442695
    %v755 = vpow.pop %v754
    %757 = vrot.lane.b32.xlu0 %v755, 112
    %v758 = vpop.permute.xlu0 %757
    %v760 = vsel %vm681, %v758, 0.0
    %761 = vadd.xlane.f32.xlu0 %v760
    %v762 = vpop.xlane.xlu0 %761
    %v763 = vrcp.pop %v762
    %v764 = vmul.f32 %v762, %v763
    %v765 = vsub.f32 1.0, %v764
    %v766 = vmul.f32 %v763, %v765
    %v767 = vadd.f32 %v763, %v766
    %vm768 = vweird.f32 %v762
    %vm769 = vweird.f32 %v763
    %vm770 = vmor %vm768, %vm769
    %v771 = vsel %vm770, %v763, %v767
    %v772 = vand.u32 2147483647, %v762
    %vm773 = vcmp.eq.f32.partialorder %v772, 8.507059e+37
    %v774 = vand.u32 %v762, 2147483648
    %v775 = vor.u32 1.1754944e-38, %v774
    %v776 = vsel %vm773, %v775, %v771
    %v777 = vmul.f32 %v755, %v776
    %s778 = sld [smem:[#allocation2 + $0x2]]
    %v779 = vadd.f32 %v777, %v678
    %v780 = vstv %s778
    %v781 = vmul.f32 %v779, %v780
    %783 = vrot.lane.b32.xlu0 %v781, 112
    %v784 = vpop.permute.xlu0 %783
    %v786 = vadd.f32 %v748, %v784
    %v787 = vsel %vm681, %v786, -inf
    %788 = vmax.xlane.f32.xlu0 %v787
    %v789 = vpop.xlane.xlu0 %788
    %v790 = vlaneseq
    %v791 = vand.u32 %v790, 127
    %vm792 = vcmp.eq.f32.partialorder %v786, %v789
    %v793 = vsel %vm792, %v791, 8
    %v794 = vsel %vm681, %v793, 2147483647
    %v795 = vand.u32 %v794, 65535
    %v796 = vshra.s32 %v794, 16
    %v797 = vcvt.s32.f32 %v795
    %v798 = vcvt.s32.f32 %v796
    %799 = vmin.xlane.f32.xlu0 %v798
    %v800 = vpop.xlane.xlu0 %799
    %vm801 = vcmp.eq.f32.partialorder %v798, %v800
    %v802 = vsel %vm801, %v797, inf
    %803 = vmin.xlane.f32.xlu0 %v802
    %v804 = vpop.xlane.xlu0 %803
    %v805 = vcvt.f32.s32 %v804
    %v806 = vcvt.f32.s32 %v800
    %v807 = vshll.u32 %v806, 16
    %v808 = vadd.s32 %v807, %v805
    %v809 = vpack.c.b16 %v808, %v808
    %v810 = vpack.c.b8 %v809, %v809
    %vm811 = vcmask 1040384
    %vm812 = vsmask.f32 256
    %vm813 = vmand %vm811, %vm812
    %v814 = vld [vmem:[%s4] sm:$0x1]
    %v815 = vsel %vm813, %v810, %v814
    %816 = vst [vmem:[%s4] sm:$0x1] %v815
    // Predicated region
    $region22: #{majority_vote.1} parent=1 // pred_check
      _
    $region23: #{majority_vote.1} parent=1 // pred_check_branch
      %818 = sbr.rel (0) target = $region25
    $region24: #{majority_vote.1} parent=1 // pred_region
      _
    $region25: #{majority_vote.1} parent=1 // pred_fallthru
      _
    // Predicated region
    $region26: #{majority_vote.1} parent=1 // pred_check
      _
    $region27: #{majority_vote.1} parent=1 // pred_check_branch
      %820 = sbr.rel (0) target = $region29
    $region28: #{majority_vote.1} parent=1 // pred_region
      _
    $region29: #{majority_vote.1} parent=1 // pred_fallthru
      _
    %821 = vsyncpa [#allocation3], 1

</llo_original>
